<compile_context>
chip_gen: v6e
topology: v6e:2x2x1
jax: 0.10.0
libtpu: 0.0.40
codegen_flags: <defaults>
</compile_context>

<pallas_src>
import math

import jax
import jax.numpy as jnp
from jax.experimental import pallas as pl
from jax.experimental.pallas import tpu as pltpu

IN_FEATURES = 2
OUT_FEATURES = 1

LANES = 128        # batch tile (lane axis) must be a multiple of this
MAX_TB = 1024      # max batch-tile per grid step; x block = 2*1024*4B = 8 KiB


def _round_up(n: int, m: int) -> int:
    return ((n + m - 1) // m) * m


def lr_kernel(params_ref, x_ref, o_ref):
    # params_ref: SMEM (3,) f32 = [w0, w1, b]
    # x_ref:      VMEM (2, TB) f32 -- features on sublanes, batch on lanes
    # o_ref:      VMEM (1, TB) f32 -- lane-dense output
    w0 = params_ref[0]
    w1 = params_ref[1]
    b = params_ref[2]

    x = x_ref[...]                                 # (2, TB)
    z = x[0:1, :] * w0 + x[1:2, :] * w1 + b        # (1, TB), pure VPU

    # Numerically stable sigmoid: exp of a non-positive argument only.
    e = jnp.exp(-jnp.abs(z))                       # EUP; value in (0, 1]
    pos = 1.0 / (1.0 + e)                          # sigmoid(|z|)
    o_ref[...] = jnp.where(z >= 0.0, pos, 1.0 - pos)


def lr_forward(x, weight, bias):
    """x: (B, 2) f32; weight: (1, 2) f32 (PyTorch nn.Linear layout); bias: (1,).
    Returns sigmoid(x @ weight.T + bias) with shape (B, 1), matching LR.forward."""
    B = x.shape[0]
    TB = min(MAX_TB, _round_up(B, LANES))
    Bp = _round_up(B, TB)

    # Lane-dense, minimally padded transpose: (B, 2) -> (2, Bp).  Only 8*Bp bytes.
    x_t = jnp.pad(x.astype(jnp.float32).T, ((0, 0), (0, Bp - B)))

    # Scalars [w0, w1, b] -> SMEM (no padded weight tile, no MXU).
    params = jnp.concatenate(
        [weight.reshape(-1), bias.reshape(-1)]).astype(jnp.float32)

    out_t = pl.pallas_call(
        lr_kernel,
        out_shape=jax.ShapeDtypeStruct((OUT_FEATURES, Bp), jnp.float32),
        grid_spec=pltpu.PrefetchScalarGridSpec(
            num_scalar_prefetch=0,
            grid=(Bp // TB,),
            in_specs=[
                pl.BlockSpec(memory_space=pltpu.MemorySpace.SMEM),   # params
                pl.BlockSpec((IN_FEATURES, TB), lambda i: (0, i)),   # x tile
            ],
            out_specs=pl.BlockSpec((OUT_FEATURES, TB), lambda i: (0, i)),
        ),
        compiler_params=pltpu.CompilerParams(
            dimension_semantics=("parallel",),   # shard batch across v7x's 2 TCs
            vmem_limit_bytes=32 * 1024 * 1024,   # plenty of headroom; blocks ~KiB
        ),
    )(params, x_t)

    return out_t[:, :B].T                        # (B, 1)


if __name__ == "__main__":
    key = jax.random.PRNGKey(0)
    k_x, k_w, k_b = jax.random.split(key, 3)

    # Deterministic parameter init mimicking nn.Linear(2, 1):
    # U(-1/sqrt(fan_in), 1/sqrt(fan_in)).
    bound = 1.0 / math.sqrt(IN_FEATURES)
    weight = jax.random.uniform(k_w, (OUT_FEATURES, IN_FEATURES),
                                jnp.float32, minval=-bound, maxval=bound)
    bias = jax.random.uniform(k_b, (OUT_FEATURES,),
                              jnp.float32, minval=-bound, maxval=bound)

    # Small example batch consistent with the module: (batch=8, features=2).
    x = jax.random.normal(k_x, (8, IN_FEATURES), jnp.float32)

    out = lr_forward(x, weight, bias)
    jax.block_until_ready(out)

    # Reference check in plain JAX.
    ref = jax.nn.sigmoid(x @ weight.T + bias)
    assert out.shape == (8, 1)
    assert jnp.allclose(out, ref, atol=1e-6, rtol=1e-6), (
        f"max err {jnp.max(jnp.abs(out - ref))}")

    print("KERNEL_OK")
</pallas_src>

<mosaic_0001>
module attributes {stable_mosaic.version = 11 : i64} {
  func.func @lr_kernel(%arg0: i32, %arg1: memref<3xf32, #tpu.memory_space<smem>>, %arg2: memref<2x128xf32, #tpu.memory_space<vmem>>, %arg3: memref<1x128xf32, #tpu.memory_space<vmem>>) attributes {dimension_semantics = [#tpu.dimension_semantics<parallel>], iteration_bounds = array<i64: 1>, scalar_prefetch = 0 : i64, scratch_operands = 0 : i64, tpu.core_type = #tpu.core_type<tc>, window_params = [{transform_indices = @transform_0, window_bounds = array<i64: 3>}, {transform_indices = @transform_1, window_bounds = array<i64: 2, 128>}, {transform_indices = @transform_2, window_bounds = array<i64: 1, 128>}]} {
    %c0 = arith.constant 0 : index
    %0 = memref.load %arg1[%c0] : memref<3xf32, #tpu.memory_space<smem>>
    %c1 = arith.constant 1 : index
    %1 = memref.load %arg1[%c1] : memref<3xf32, #tpu.memory_space<smem>>
    %c2 = arith.constant 2 : index
    %2 = memref.load %arg1[%c2] : memref<3xf32, #tpu.memory_space<smem>>
    %c0_0 = arith.constant 0 : index
    %c0_1 = arith.constant 0 : index
    %3 = vector.load %arg2[%c0_0, %c0_1] : memref<2x128xf32, #tpu.memory_space<vmem>>, vector<2x128xf32>
    %4 = vector.extract_strided_slice %3 {offsets = [0, 0], sizes = [1, 128], strides = [1, 1]} : vector<2x128xf32> to vector<1x128xf32>
    %5 = vector.broadcast %0 : f32 to vector<1x128xf32>
    %6 = arith.mulf %4, %5 : vector<1x128xf32>
    %7 = vector.extract_strided_slice %3 {offsets = [1, 0], sizes = [1, 128], strides = [1, 1]} : vector<2x128xf32> to vector<1x128xf32>
    %8 = vector.broadcast %1 : f32 to vector<1x128xf32>
    %9 = arith.mulf %7, %8 : vector<1x128xf32>
    %10 = arith.addf %6, %9 : vector<1x128xf32>
    %11 = vector.broadcast %2 : f32 to vector<1x128xf32>
    %12 = arith.addf %10, %11 : vector<1x128xf32>
    %13 = math.absf %12 : vector<1x128xf32>
    %cst = arith.constant 0.000000e+00 : f32
    %14 = vector.broadcast %cst : f32 to vector<1x128xf32>
    %15 = arith.subf %14, %13 : vector<1x128xf32>
    %16 = math.exp %15 : vector<1x128xf32>
    %cst_2 = arith.constant 1.000000e+00 : f32
    %17 = vector.broadcast %cst_2 : f32 to vector<1x128xf32>
    %18 = arith.addf %17, %16 : vector<1x128xf32>
    %cst_3 = arith.constant 1.000000e+00 : f32
    %19 = vector.broadcast %cst_3 : f32 to vector<1x128xf32>
    %20 = arith.divf %19, %18 : vector<1x128xf32>
    %cst_4 = arith.constant 0.000000e+00 : f32
    %21 = vector.broadcast %cst_4 : f32 to vector<1x128xf32>
    %22 = arith.cmpf oge, %12, %21 : vector<1x128xf32>
    %cst_5 = arith.constant 1.000000e+00 : f32
    %23 = vector.broadcast %cst_5 : f32 to vector<1x128xf32>
    %24 = arith.subf %23, %20 : vector<1x128xf32>
    %25 = arith.select %22, %20, %24 : vector<1x128xi1>, vector<1x128xf32>
    %c0_6 = arith.constant 0 : index
    %c0_7 = arith.constant 0 : index
    %26 = vector.load %arg3[%c0_6, %c0_7] : memref<1x128xf32, #tpu.memory_space<vmem>>, vector<1x128xf32>
    tpu.vector_store %arg3[%c0_6, %c0_7], %25 {strides = array<i32>} : memref<1x128xf32, #tpu.memory_space<vmem>>, vector<1x128xf32>,
    return
  }
  func.func @transform_0(%arg0: i32) -> i32 {
    %c0_i32 = arith.constant 0 : i32
    %c0_i32_0 = arith.constant 0 : i32
    return %c0_i32 : i32
  }
  func.func @transform_1(%arg0: i32) -> (i32, i32) {
    %c0_i32 = arith.constant 0 : i32
    %c0_i32_0 = arith.constant 0 : i32
    return %c0_i32, %arg0 : i32, i32
  }
  func.func @transform_2(%arg0: i32) -> (i32, i32) {
    %c0_i32 = arith.constant 0 : i32
    %c0_i32_0 = arith.constant 0 : i32
    return %c0_i32, %arg0 : i32, i32
  }
}

</mosaic_0001>

<llo_original>
// kernel: tpu_custom_call.1
$region0: #{tpu_custom_call.1}
  #allocation0 [shape = 'u32[]', space=smem, size = 0x4, offset = 0x4, fixed_abs, tag = 'smem constant byte address 0x4 - core index']
  #allocation1 [shape = 'u32[144,128]{1,0:T(1,128)}', space=vmem, size = 0x12000, scoped, tag = 'internal scratch']
  %s0 = inlined_call_operand.hbm [shape: f32[3], index: 0, kind: input, shape index: {}]
  %s1 = inlined_call_operand.hbm [shape: f32[2,128], index: 1, kind: input, shape index: {}]
  %s2 = inlined_call_operand.hbm [shape: f32[1,128], index: 2, kind: output, shape index: {}]
  %s3 = sld [smem:[#allocation0]]
  $region26: #{tpu_custom_call.1} parent=0
    _
  %s5 = ssub.s32 1, %s3
  %s6 = scalar_select 0, %s5, %s3
  $region1: #{tpu_custom_call.1} parent=0
    #allocation2 [shape = 'u8[512]{0}', space=smem, size = 0x200, scoped, tag = 'input window, operand 0, single buffered']
    #allocation3 [shape = 's32[1]{0}', space=sflag, size = 0x4, scoped, tag = 'scoped memory for tpu_custom_call.1']
    #allocation4 [shape = 's32[1]{0}', space=sflag, size = 0x4, scoped, tag = 'scoped memory for tpu_custom_call.1']
    #allocation5 [shape = 's32[1]{0}', space=sflag, size = 0x4, scoped, tag = 'scoped memory for tpu_custom_call.1']
    #allocation6 [shape = 'u8[1024]{0}', space=vmem, size = 0x400, scoped, tag = 'input window, operand 1, single buffered']
    #allocation7 [shape = 'u8[512]{0}', space=vmem, size = 0x400, scoped, tag = 'output window, operand 0, single buffered']
    %7 = vsyncpa [#allocation5], 0
    %8 = vsyncpa [#allocation3], 0
    %9 = vsyncpa [#allocation4], 0
    // Predicated region
    $region2: #{tpu_custom_call.1} parent=1 // pred_check
      _
    $region3: #{tpu_custom_call.1} parent=1 // pred_check_branch
      %11 = sbr.rel (0) target = $region5
    $region4: #{tpu_custom_call.1} parent=1 // pred_region
      %s13 = ssub.s32 16, 16
      %14 = vsyncadd [#allocation5], %s13
      %17 = dma.hbm_to_smem %s0, 16, [#allocation2], [#allocation5]
    $region5: #{tpu_custom_call.1} parent=1 // pred_fallthru
      _
    // Predicated region
    $region6: #{tpu_custom_call.1} parent=1 // pred_check
      _
    $region7: #{tpu_custom_call.1} parent=1 // pred_check_branch
      %19 = sbr.rel (0) target = $region9
    $region8: #{tpu_custom_call.1} parent=1 // pred_region
      %s21 = ssub.s32 32, 32
      %22 = vsyncadd [#allocation3], %s21
      %s24 = sshll.u32 [#allocation6], 4
      %s25 = int_to_ptr.vmem [resolvable:$true] %s24
      %27 = dma.hbm_to_vmem [thread:$0]  %s1, 32, %s25, [#allocation3]
    $region9: #{tpu_custom_call.1} parent=1 // pred_fallthru
      _
    // Predicated region
    $region10: #{tpu_custom_call.1} parent=1 // pred_check
      _
    $region11: #{tpu_custom_call.1} parent=1 // pred_check_branch
      %29 = sbr.rel (0) target = $region13
    $region12: #{tpu_custom_call.1} parent=1 // pred_region
      %30 = dma.done [#allocation5], 16
    $region13: #{tpu_custom_call.1} parent=1 // pred_fallthru
      _
    // Predicated region
    $region14: #{tpu_custom_call.1} parent=1 // pred_check
      _
    $region15: #{tpu_custom_call.1} parent=1 // pred_check_branch
      %32 = sbr.rel (0) target = $region17
    $region16: #{tpu_custom_call.1} parent=1 // pred_region
      %33 = dma.done [#allocation3], 32
    $region17: #{tpu_custom_call.1} parent=1 // pred_fallthru
      _
    %34 = sfence
    %s35 = sld [smem:[#allocation2]]
    %s36 = sld [smem:[#allocation2 + $0x1]]
    %s37 = sld [smem:[#allocation2 + $0x2]]
    %v38 = vld [vmem:[#allocation6] sm:$0x3]
    %v39 = vstv %s35
    %v40 = vmul.f32 %v38, %v39
    %v41 = vstv %s36
    %v42 = vmul.f32 %v38, %v41
    %v44 = vrot.slane %v42, 1
    %v46 = vadd.f32 %v40, %v44
    %v47 = vstv %s37
    %v48 = vadd.f32 %v46, %v47
    %v49 = vand.u32 2147483647, %v48
    %v50 = vsub.f32 0.0, %v49
    %v51 = vmul.f32 %v50, 1.442695
    %v52 = vpow.pop %v51
    %v53 = vadd.f32 %v52, 1.0
    %v54 = vrcp.pop %v53
    %v55 = vmul.f32 1.0, %v54
    %vm56 = vcmp.ge.f32.partialorder %v48, 0.0
    %v57 = vsub.f32 1.0, %v55
    %v58 = vsel %vm56, %v55, %v57
    %59 = vst [vmem:[#allocation7] sm:$0x1] %v58
    // Predicated region
    $region18: #{tpu_custom_call.1} parent=1 // pred_check
      _
    $region19: #{tpu_custom_call.1} parent=1 // pred_check_branch
      %61 = sbr.rel (0) target = $region21
    $region20: #{tpu_custom_call.1} parent=1 // pred_region
      %s63 = ssub.s32 16, 16
      %64 = vsyncadd [#allocation4], %s63
      %s66 = sshll.u32 [#allocation7], 4
      %s67 = int_to_ptr.vmem [resolvable:$true] %s66
      %69 = dma.vmem_to_hbm [thread:$0]  %s67, 16, %s2, [#allocation4]
    $region21: #{tpu_custom_call.1} parent=1 // pred_fallthru
      _
    // Predicated region
    $region22: #{tpu_custom_call.1} parent=1 // pred_check
      _
    $region23: #{tpu_custom_call.1} parent=1 // pred_check_branch
      %71 = sbr.rel (0) target = $region25
    $region24: #{tpu_custom_call.1} parent=1 // pred_region
      %72 = dma.done [#allocation4], 16
    $region25: #{tpu_custom_call.1} parent=1 // pred_fallthru
      _
    %73 = vsyncpa [#allocation3], 1
    %74 = vsyncpa [#allocation4], 1
    %75 = vsyncpa [#allocation5], 1

</llo_original>
